<compile_context>
chip_gen: v6e
topology: v6e:2x2x1
jax: 0.10.0
libtpu: 0.0.40
codegen_flags: <defaults>
</compile_context>

<pallas_src>
import jax
import jax.numpy as jnp
from jax import lax
from jax.experimental import pallas as pl
from jax.experimental.pallas import tpu as pltpu


_LANE_COLS = 512    # lane-dense minor dim (multiple of 128)
_BLOCK_ROWS = 512   # (512, 512) f32 block = 1 MiB; in+out double-buffered ~4 MiB VMEM


# ----------------------------- kernels --------------------------------------

def _round_kernel(x_ref, o_ref):
    # Eval path: torch.round == round-half-to-even == jnp.round.
    o_ref[...] = jnp.round(x_ref[...].astype(jnp.float32)).astype(o_ref.dtype)


def _noise_kernel(seed_ref, x_ref, o_ref):
    # Training / fine_tune path: x + (U[0,1) - 0.5).
    blk_rows, cols = x_ref.shape
    i = pl.program_id(0)

    # Global element index for every element of this block (int32, wrap is OK).
    row = lax.broadcasted_iota(jnp.int32, (blk_rows, cols), 0)
    col = lax.broadcasted_iota(jnp.int32, (blk_rows, cols), 1)
    idx = (i * blk_rows + row) * cols + col

    # Counter-based hash (murmur3-style finalizer in int32 two's-complement
    # arithmetic). Pure VPU work: add / mul / xor / shift; no EUP, no TPU-only
    # PRNG primitives. Seed is folded in so runs are reproducible.
    z = idx + seed_ref[0] * jnp.int32(-1640531527)        # 0x9E3779B9
    z = z ^ (z >> 16)
    z = z * jnp.int32(-2048144789)                        # 0x85EBCA6B
    z = z ^ (z >> 13)
    z = z * jnp.int32(-1028477387)                        # 0xC2B2AE35
    z = z ^ (z >> 16)

    bits24 = z & jnp.int32(0x00FFFFFF)                    # 24 well-mixed bits
    u = bits24.astype(jnp.float32) * jnp.float32(1.0 / (1 << 24))   # U[0, 1)

    xv = x_ref[...].astype(jnp.float32)                   # f32 register compute
    o_ref[...] = (xv + (u - jnp.float32(0.5))).astype(o_ref.dtype)


# ----------------------------- wrapper ---------------------------------------

def _lane_dense_2d(x):
    """Flatten x to a lane-dense (rows, _LANE_COLS) view, padding the tail."""
    total = x.size
    rows = -(-total // _LANE_COLS)
    padded = rows * _LANE_COLS
    flat = x.reshape(-1)
    if padded != total:
        flat = jnp.pad(flat, (0, padded - total))
    return flat.reshape(rows, _LANE_COLS), total


def quantizer_forward(x, *, training=False, fine_tune=False, seed=0):
    """Pallas implementation of Quantizer.forward (layout/dtype preserving)."""
    orig_shape = x.shape
    x2d, total = _lane_dense_2d(x)
    rows, cols = x2d.shape

    # Block choice: full rows if small, otherwise 512-row tiles (div. by 8).
    block_rows = _BLOCK_ROWS if rows >= _BLOCK_ROWS else rows
    grid = (pl.cdiv(rows, block_rows),)
    blk_spec = pl.BlockSpec((block_rows, cols), lambda i: (i, 0))

    itemsize = jnp.dtype(x2d.dtype).itemsize
    cost = pl.CostEstimate(flops=8 * total, transcendentals=0,
                           bytes_accessed=2 * total * itemsize)
    cparams = pltpu.CompilerParams(dimension_semantics=("parallel",))

    if training or fine_tune:
        seed_arr = jnp.asarray([seed], dtype=jnp.int32)
        out2d = pl.pallas_call(
            _noise_kernel,
            out_shape=jax.ShapeDtypeStruct(x2d.shape, x2d.dtype),
            grid=grid,
            in_specs=[
                pl.BlockSpec(memory_space=pltpu.MemorySpace.SMEM),  # seed scalar
                blk_spec,
            ],
            out_specs=blk_spec,
            compiler_params=cparams,
            cost_estimate=cost,
        )(seed_arr, x2d)
    else:
        out2d = pl.pallas_call(
            _round_kernel,
            out_shape=jax.ShapeDtypeStruct(x2d.shape, x2d.dtype),
            grid=grid,
            in_specs=[blk_spec],
            out_specs=blk_spec,
            compiler_params=cparams,
            cost_estimate=cost,
        )(x2d)

    flat = out2d.reshape(-1)
    if flat.size != total:
        flat = flat[:total]
    return flat.reshape(orig_shape)


# ------------------------------- main -----------------------------------------

if __name__ == "__main__":
    key = jax.random.PRNGKey(0)
    x = jax.random.normal(key, (2, 4, 16, 16), dtype=jnp.float32) * 3.0

    # Eval path: half-to-even rounding.
    y_eval = jax.block_until_ready(quantizer_forward(x, training=False))
    assert y_eval.shape == x.shape and y_eval.dtype == x.dtype
    assert jnp.allclose(y_eval, jnp.round(x)), "round path mismatch"

    # Training path: additive uniform noise in [-0.5, 0.5).
    y_train = jax.block_until_ready(quantizer_forward(x, training=True, seed=42))
    assert y_train.shape == x.shape and y_train.dtype == x.dtype
    diff = y_train - x
    eps = 1e-5  # slack for f32 rounding of (x + noise) - x
    assert bool(jnp.all(diff >= -0.5 - eps)), "noise below range"
    assert bool(jnp.all(diff <= 0.5 + eps)), "noise above range"
    assert float(jnp.std(diff)) > 0.05, "noise is degenerate"

    # fine_tune flag takes the same noisy path, deterministically per seed.
    y_ft = jax.block_until_ready(quantizer_forward(x, fine_tune=True, seed=42))
    assert bool(jnp.all(y_ft == y_train)), "seeded noise not deterministic"

    print("KERNEL_OK")
</pallas_src>

<mosaic_0001>
module attributes {stable_mosaic.version = 11 : i64} {
  func.func @_round_kernel(%arg0: i32, %arg1: memref<4x512xf32, #tpu.memory_space<vmem>>, %arg2: memref<4x512xf32, #tpu.memory_space<vmem>>) attributes {dimension_semantics = [#tpu.dimension_semantics<parallel>], iteration_bounds = array<i64: 1>, scalar_prefetch = 0 : i64, scratch_operands = 0 : i64, tpu.core_type = #tpu.core_type<tc>, window_params = [{transform_indices = @transform_0, window_bounds = array<i64: 4, 512>}, {transform_indices = @transform_1, window_bounds = array<i64: 4, 512>}]} {
    %c0 = arith.constant 0 : index
    %c0_0 = arith.constant 0 : index
    %0 = vector.load %arg1[%c0, %c0_0] : memref<4x512xf32, #tpu.memory_space<vmem>>, vector<4x512xf32>
    %1 = math.roundeven %0 : vector<4x512xf32>
    %c0_1 = arith.constant 0 : index
    %c0_2 = arith.constant 0 : index
    %2 = vector.load %arg2[%c0_1, %c0_2] : memref<4x512xf32, #tpu.memory_space<vmem>>, vector<4x512xf32>
    tpu.vector_store %arg2[%c0_1, %c0_2], %1 {strides = array<i32>} : memref<4x512xf32, #tpu.memory_space<vmem>>, vector<4x512xf32>,
    return
  }
  func.func @transform_0(%arg0: i32) -> (i32, i32) {
    %c0_i32 = arith.constant 0 : i32
    %c0_i32_0 = arith.constant 0 : i32
    return %arg0, %c0_i32 : i32, i32
  }
  func.func @transform_1(%arg0: i32) -> (i32, i32) {
    %c0_i32 = arith.constant 0 : i32
    %c0_i32_0 = arith.constant 0 : i32
    return %arg0, %c0_i32 : i32, i32
  }
}

</mosaic_0001>

<llo_original>
// kernel: tpu_custom_call.1
$region0: #{tpu_custom_call.1}
  #allocation0 [shape = 'u32[]', space=smem, size = 0x4, offset = 0x4, fixed_abs, tag = 'smem constant byte address 0x4 - core index']
  #allocation1 [shape = 'u32[144,128]{1,0:T(1,128)}', space=vmem, size = 0x12000, scoped, tag = 'internal scratch']
  %s0 = inlined_call_operand.hbm [shape: f32[4,512], index: 0, kind: input, shape index: {}]
  %s1 = inlined_call_operand.hbm [shape: f32[4,512], index: 1, kind: output, shape index: {}]
  %s2 = sld [smem:[#allocation0]]
  $region18: #{tpu_custom_call.1} parent=0
    _
  %s4 = ssub.s32 1, %s2
  %s5 = scalar_select 0, %s4, %s2
  $region1: #{tpu_custom_call.1} parent=0
    #allocation2 [shape = 'u8[8192]{0}', space=vmem, size = 0x2000, scoped, tag = 'input window, operand 0, single buffered']
    #allocation3 [shape = 's32[1]{0}', space=sflag, size = 0x4, scoped, tag = 'scoped memory for tpu_custom_call.1']
    #allocation4 [shape = 's32[1]{0}', space=sflag, size = 0x4, scoped, tag = 'scoped memory for tpu_custom_call.1']
    #allocation5 [shape = 'u8[8192]{0}', space=vmem, size = 0x2000, scoped, tag = 'output window, operand 0, single buffered']
    %6 = vsyncpa [#allocation3], 0
    %7 = vsyncpa [#allocation4], 0
    // Predicated region
    $region2: #{tpu_custom_call.1} parent=1 // pred_check
      _
    $region3: #{tpu_custom_call.1} parent=1 // pred_check_branch
      %9 = sbr.rel (0) target = $region5
    $region4: #{tpu_custom_call.1} parent=1 // pred_region
      %s11 = ssub.s32 256, 256
      %12 = vsyncadd [#allocation3], %s11
      %s14 = sshll.u32 [#allocation2], 4
      %s15 = int_to_ptr.vmem [resolvable:$true] %s14
      %17 = dma.hbm_to_vmem [thread:$0]  %s0, 256, %s15, [#allocation3]
    $region5: #{tpu_custom_call.1} parent=1 // pred_fallthru
      _
    // Predicated region
    $region6: #{tpu_custom_call.1} parent=1 // pred_check
      _
    $region7: #{tpu_custom_call.1} parent=1 // pred_check_branch
      %19 = sbr.rel (0) target = $region9
    $region8: #{tpu_custom_call.1} parent=1 // pred_region
      %20 = dma.done [#allocation3], 256
    $region9: #{tpu_custom_call.1} parent=1 // pred_fallthru
      _
    %v21 = vld [vmem:[#allocation2] sm:$0xff]
    %v22 = vld [vmem:[#allocation2 + $0x8] sm:$0xff]
    %v23 = vround.ne.pseudo %v21
    %v24 = vround.ne.pseudo %v22
    %25 = vst [vmem:[#allocation5] sm:$0xff] %v23
    %26 = vst [vmem:[#allocation5 + $0x8] sm:$0xff] %v24
    // Predicated region
    $region10: #{tpu_custom_call.1} parent=1 // pred_check
      _
    $region11: #{tpu_custom_call.1} parent=1 // pred_check_branch
      %28 = sbr.rel (0) target = $region13
    $region12: #{tpu_custom_call.1} parent=1 // pred_region
      %s30 = ssub.s32 256, 256
      %31 = vsyncadd [#allocation4], %s30
      %s33 = sshll.u32 [#allocation5], 4
      %s34 = int_to_ptr.vmem [resolvable:$true] %s33
      %36 = dma.vmem_to_hbm [thread:$0]  %s34, 256, %s1, [#allocation4]
    $region13: #{tpu_custom_call.1} parent=1 // pred_fallthru
      _
    // Predicated region
    $region14: #{tpu_custom_call.1} parent=1 // pred_check
      _
    $region15: #{tpu_custom_call.1} parent=1 // pred_check_branch
      %38 = sbr.rel (0) target = $region17
    $region16: #{tpu_custom_call.1} parent=1 // pred_region
      %39 = dma.done [#allocation4], 256
    $region17: #{tpu_custom_call.1} parent=1 // pred_fallthru
      _
    %40 = vsyncpa [#allocation3], 1
    %41 = vsyncpa [#allocation4], 1

</llo_original>
